<compile_context>
chip_gen: v7x
topology: tpu7x:2x2x1
jax: 0.10.0
libtpu: 0.0.40
codegen_flags: <defaults>
</compile_context>

<pallas_src>
import functools
import math

import jax
import jax.numpy as jnp
from jax import lax
from jax.experimental import pallas as pl
from jax.experimental.pallas import tpu as pltpu


def _round_up(x, m):
    return ((x + m - 1) // m) * m


def _vmem_capacity_bytes():
    """Physical per-core VMEM (128 MiB on v5e/v6e, 64 MiB on v7x)."""
    try:
        return int(pltpu.get_tpu_info().vmem_capacity_bytes)
    except Exception:
        return 64 << 20  # conservative fallback


# ----------------------------- kernels --------------------------------------


def _ffn_resident_kernel(x_ref, w1_ref, b1_ref, w2_ref, b2_ref, o_ref,
                         *, tk_inner, num_j, cdtype):
    """Weights fully resident in VMEM (grid = (num_m,)).

    d_ff is chunked inside the kernel so the live intermediate h is only
    (tm, tk_inner); no cross-grid accumulator scratch is needed.
    """
    x = x_ref[...].astype(cdtype)  # f32 in HBM -> compute dtype in-kernel

    def chunk(w1c, b1c, w2c):
        h = jnp.dot(x, w1c, preferred_element_type=jnp.float32)
        h = jnp.maximum(h + b1c, 0.0)  # bias + ReLU in f32 on the VPU
        # dropout == identity (eval mode)
        return jnp.dot(h.astype(cdtype), w2c, preferred_element_type=jnp.float32)

    if num_j == 1:
        acc = chunk(w1_ref[...], b1_ref[...], w2_ref[...])
    else:
        def body(j, a):
            off = pl.multiple_of(j * tk_inner, tk_inner)
            return a + chunk(w1_ref[:, pl.ds(off, tk_inner)],
                             b1_ref[:, pl.ds(off, tk_inner)],
                             w2_ref[pl.ds(off, tk_inner), :])
        acc = lax.fori_loop(0, num_j, body, jnp.zeros(o_ref.shape, jnp.float32))

    o_ref[...] = (acc + b2_ref[...]).astype(o_ref.dtype)


def _ffn_stream_kernel(x_ref, w1_ref, b1_ref, w2_ref, b2_ref, o_ref, acc_ref,
                       *, cdtype):
    """d_ff streamed as grid axis 1 (reduction axis, innermost)."""
    k = pl.program_id(1)

    @pl.when(k == 0)
    def _init():
        acc_ref[...] = jnp.zeros_like(acc_ref)

    x = x_ref[...].astype(cdtype)
    h = jnp.dot(x, w1_ref[...], preferred_element_type=jnp.float32)
    h = jnp.maximum(h + b1_ref[...], 0.0)
    # dropout == identity (eval mode)
    acc_ref[...] += jnp.dot(h.astype(cdtype), w2_ref[...],
                            preferred_element_type=jnp.float32)

    @pl.when(k == pl.num_programs(1) - 1)
    def _finalize():
        o_ref[...] = (acc_ref[...] + b2_ref[...]).astype(o_ref.dtype)


# ----------------------------- wrapper ---------------------------------------


class PallasFeedForward:
    """Holds pre-padded / pre-cast parameters and calls the Pallas kernels."""

    def __init__(self, w1, b1, w2, b2, *, compute_dtype=jnp.bfloat16,
                 tm=256, tk=None):
        self.d_model, self.d_ff = w1.shape
        self.cdtype = compute_dtype
        cbytes = jnp.dtype(compute_dtype).itemsize

        # ---- generation-aware VMEM planning ----
        cap = _vmem_capacity_bytes()
        if cap >= (96 << 20):            # v5e / v6e: 128 MiB physical VMEM
            self.weight_budget = 72 << 20
            self.vmem_cap = 100 << 20
            self.split_m_for_cores = False   # single TensorCore per chip
        else:                            # v7x: 64 MiB per TensorCore, 2 cores
            self.weight_budget = 24 << 20
            self.vmem_cap = int(cap * 0.8)
            self.split_m_for_cores = True

        self.d_model_p = _round_up(self.d_model, 128)
        d_ff_128 = _round_up(self.d_ff, 128)

        if tk is None:
            resident = 2 * self.d_model_p * d_ff_128 * cbytes <= self.weight_budget
            if resident:
                tk_eff = d_ff_128                       # weights fully resident
            else:
                # double-buffered (w1 + w2) chunks must fit the budget
                tk_eff = (self.weight_budget
                          // (4 * self.d_model_p * cbytes)) // 128 * 128
                tk_eff = max(512, min(tk_eff, d_ff_128))   # >=512 keeps MXU fed
        else:
            tk_eff = max(128, min(_round_up(tk, 128), d_ff_128))

        self.tk_eff = tk_eff
        self.d_ff_p = _round_up(self.d_ff, tk_eff)
        self.num_k = self.d_ff_p // tk_eff
        self.tm = max(8, _round_up(tm, 8))

        # inner d_ff chunk for the resident path (must divide d_ff_p evenly)
        self.tk_inner = 128
        for c in (512, 384, 256, 128):
            if self.d_ff_p % c == 0:
                self.tk_inner = c
                break

        # ---- pad + cast weights ONCE (hoisted out of the per-call path) ----
        def pad2(a, s0, s1):
            return jnp.pad(a, ((0, s0 - a.shape[0]), (0, s1 - a.shape[1])))

        self.w1 = pad2(w1, self.d_model_p, self.d_ff_p).astype(compute_dtype)
        self.w2 = pad2(w2, self.d_ff_p, self.d_model_p).astype(compute_dtype)
        self.b1 = jnp.pad(b1, (0, self.d_ff_p - self.d_ff)).reshape(1, -1).astype(jnp.float32)
        self.b2 = jnp.pad(b2, (0, self.d_model_p - self.d_model)).reshape(1, -1).astype(jnp.float32)

    # ------------------------------------------------------------------------

    def __call__(self, x):
        orig_shape = x.shape
        d_model = orig_shape[-1]
        assert d_model == self.d_model
        x2d = x.reshape(-1, d_model)
        M = x2d.shape[0]

        tm_eff = min(self.tm, _round_up(M, 8))
        M_p = _round_up(M, tm_eff)
        num_m = M_p // tm_eff
        # v7x: shard the (parallel) m axis across both TensorCores when the
        # weights are resident (no restream cost from the extra m tile).
        if self.split_m_for_cores and self.num_k == 1 and num_m == 1 and M_p >= 16:
            tm_eff = _round_up(M_p // 2, 8)
            M_p = _round_up(M, tm_eff)
            num_m = M_p // tm_eff

        # pad only the activations, and only when actually needed
        if M_p != M or self.d_model_p != d_model:
            x2d = jnp.pad(x2d, ((0, M_p - M), (0, self.d_model_p - d_model)))

        out = self._run(x2d, tm_eff, num_m)
        return out[:M, :d_model].reshape(orig_shape)

    # ------------------------------------------------------------------------

    def _run(self, x2d, tm_eff, num_m):
        cbytes = jnp.dtype(self.cdtype).itemsize
        xbytes = jnp.dtype(x2d.dtype).itemsize
        obytes = xbytes
        dmp, dfp, tk = self.d_model_p, self.d_ff_p, self.tk_eff
        M_p = x2d.shape[0]
        out_shape = jax.ShapeDtypeStruct((M_p, dmp), x2d.dtype)

        if self.num_k == 1:
            kern = functools.partial(_ffn_resident_kernel,
                                     tk_inner=self.tk_inner,
                                     num_j=dfp // self.tk_inner,
                                     cdtype=self.cdtype)
            grid_spec = pltpu.PrefetchScalarGridSpec(
                num_scalar_prefetch=0,
                grid=(num_m,),
                in_specs=[
                    pl.BlockSpec((tm_eff, dmp), lambda i: (i, 0)),
                    pl.BlockSpec((dmp, dfp), lambda i: (0, 0),
                                 pipeline_mode=pl.Buffered(1)),
                    pl.BlockSpec((1, dfp), lambda i: (0, 0),
                                 pipeline_mode=pl.Buffered(1)),
                    pl.BlockSpec((dfp, dmp), lambda i: (0, 0),
                                 pipeline_mode=pl.Buffered(1)),
                    pl.BlockSpec((1, dmp), lambda i: (0, 0),
                                 pipeline_mode=pl.Buffered(1)),
                ],
                out_specs=pl.BlockSpec((tm_eff, dmp), lambda i: (i, 0)),
            )
            sem = ("parallel",)
            weight_stream_factor = 1
            vmem_est = (
                2 * tm_eff * dmp * xbytes                 # x tile (f32, 2x buffered)
                + 2 * tm_eff * dmp * obytes               # out tile
                + 2 * dmp * dfp * cbytes                  # resident w1 + w2
                + dfp * 4 + dmp * 4                       # biases
                + tm_eff * dmp * 4                        # f32 loop-carry accumulator
                + tm_eff * self.tk_inner * (4 + cbytes)   # h f32 + bf16 copy
                + tm_eff * dmp * cbytes                   # in-kernel bf16 copy of x
            )
        else:
            kern = functools.partial(_ffn_stream_kernel, cdtype=self.cdtype)
            grid_spec = pltpu.PrefetchScalarGridSpec(
                num_scalar_prefetch=0,
                grid=(num_m, self.num_k),                 # reduction (d_ff) axis last
                in_specs=[
                    pl.BlockSpec((tm_eff, dmp), lambda i, k: (i, 0)),
                    pl.BlockSpec((dmp, tk), lambda i, k: (0, k)),
                    pl.BlockSpec((1, tk), lambda i, k: (0, k)),
                    pl.BlockSpec((tk, dmp), lambda i, k: (k, 0)),
                    pl.BlockSpec((1, dmp), lambda i, k: (0, 0),
                                 pipeline_mode=pl.Buffered(1)),
                ],
                out_specs=pl.BlockSpec((tm_eff, dmp), lambda i, k: (i, 0)),
                scratch_shapes=[pltpu.VMEM((tm_eff, dmp), jnp.float32)],
            )
            sem = ("parallel", "arbitrary")
            weight_stream_factor = num_m                  # weights re-streamed per m tile
            vmem_est = (
                2 * tm_eff * dmp * xbytes
                + 2 * tm_eff * dmp * obytes
                + 2 * 2 * dmp * tk * cbytes               # double-buffered w1+w2 chunks
                + 2 * tk * 4 + dmp * 4
                + tm_eff * dmp * 4                        # accumulator scratch
                + tm_eff * tk * (4 + cbytes)              # h f32 + bf16 copy
                + tm_eff * dmp * cbytes                   # bf16 copy of x
            )

        vmem_limit = min(max(int(vmem_est * 1.4) + (2 << 20), 16 << 20),
                         self.vmem_cap)

        cost = pl.CostEstimate(
            flops=4 * M_p * dmp * dfp,                    # two matmuls
            transcendentals=0,
            bytes_accessed=(M_p * dmp * xbytes
                            + weight_stream_factor * 2 * dmp * dfp * cbytes
                            + dfp * 4 + dmp * 4
                            + M_p * dmp * obytes),
        )

        return pl.pallas_call(
            kern,
            out_shape=out_shape,
            grid_spec=grid_spec,
            compiler_params=pltpu.CompilerParams(
                dimension_semantics=sem,
                vmem_limit_bytes=vmem_limit,
            ),
            cost_estimate=cost,
        )(x2d, self.w1, self.b1, self.w2, self.b2)


# ----------------------------- init & demo -----------------------------------


def init_params(key, d_model, d_ff):
    """Matches nn.Linear's default init (uniform +-1/sqrt(fan_in)); weights
    stored (in, out) = transpose of PyTorch's (out, in)."""
    k1, k2, k3, k4 = jax.random.split(key, 4)
    lim1 = 1.0 / math.sqrt(d_model)
    lim2 = 1.0 / math.sqrt(d_ff)
    w1 = jax.random.uniform(k1, (d_model, d_ff), jnp.float32, -lim1, lim1)
    b1 = jax.random.uniform(k2, (d_ff,), jnp.float32, -lim1, lim1)
    w2 = jax.random.uniform(k3, (d_ff, d_model), jnp.float32, -lim2, lim2)
    b2 = jax.random.uniform(k4, (d_model,), jnp.float32, -lim2, lim2)
    return w1, b1, w2, b2


if __name__ == "__main__":
    # Small but lane-dense shapes (d_model, d_ff multiples of 128).
    batch, seq, d_model, d_ff = 2, 8, 128, 256

    key = jax.random.PRNGKey(0)
    kx, kp = jax.random.split(key)
    x = jax.random.normal(kx, (batch, seq, d_model), jnp.float32)
    w1, b1, w2, b2 = init_params(kp, d_model, d_ff)

    ffn = PallasFeedForward(w1, b1, w2, b2)   # pads + casts weights once
    out = ffn(x)
    jax.block_until_ready(out)

    # Reference in plain JAX with the same bf16-matmul / f32-accumulate recipe
    # (eval-mode dropout = identity).
    x2d = x.reshape(batch * seq, d_model)
    xb = x2d.astype(jnp.bfloat16)
    h_ref = jnp.maximum(
        jnp.dot(xb, w1.astype(jnp.bfloat16),
                preferred_element_type=jnp.float32) + b1, 0.0)
    ref = jnp.dot(h_ref.astype(jnp.bfloat16), w2.astype(jnp.bfloat16),
                  preferred_element_type=jnp.float32) + b2

    out2d = out.reshape(batch * seq, d_model)
    assert out.shape == (batch, seq, d_model)
    assert jnp.allclose(out2d, ref.astype(out2d.dtype), atol=2e-2, rtol=2e-2), \
        "mismatch vs reference"

    print("KERNEL_OK")
</pallas_src>

<mosaic_0001>
module attributes {stable_mosaic.version = 11 : i64} {
  func.func @_ffn_resident_kernel(%arg0: i32, %arg1: memref<8x128xf32, #tpu.memory_space<vmem>>, %arg2: memref<128x256xbf16, #tpu.memory_space<vmem>>, %arg3: memref<1x256xf32, #tpu.memory_space<vmem>>, %arg4: memref<256x128xbf16, #tpu.memory_space<vmem>>, %arg5: memref<1x128xf32, #tpu.memory_space<vmem>>, %arg6: memref<8x128xf32, #tpu.memory_space<vmem>>) attributes {dimension_semantics = [#tpu.dimension_semantics<parallel>], iteration_bounds = array<i64: 2>, scalar_prefetch = 0 : i64, scratch_operands = 0 : i64, tpu.core_type = #tpu.core_type<tc>, window_params = [{transform_indices = @transform_0, window_bounds = array<i64: 8, 128>}, {pipeline_mode = #tpu.pipeline_mode<synchronous>, transform_indices = @transform_1, window_bounds = array<i64: 128, 256>}, {pipeline_mode = #tpu.pipeline_mode<synchronous>, transform_indices = @transform_2, window_bounds = array<i64: 1, 256>}, {pipeline_mode = #tpu.pipeline_mode<synchronous>, transform_indices = @transform_3, window_bounds = array<i64: 256, 128>}, {pipeline_mode = #tpu.pipeline_mode<synchronous>, transform_indices = @transform_4, window_bounds = array<i64: 1, 128>}, {transform_indices = @transform_5, window_bounds = array<i64: 8, 128>}]} {
    %c0 = arith.constant 0 : index
    %c0_0 = arith.constant 0 : index
    %0 = vector.load %arg1[%c0, %c0_0] : memref<8x128xf32, #tpu.memory_space<vmem>>, vector<8x128xf32>
    %1 = arith.truncf %0 : vector<8x128xf32> to vector<8x128xbf16>
    %c0_1 = arith.constant 0 : index
    %c0_2 = arith.constant 0 : index
    %2 = vector.load %arg2[%c0_1, %c0_2] : memref<128x256xbf16, #tpu.memory_space<vmem>>, vector<128x256xbf16>
    %c0_3 = arith.constant 0 : index
    %c0_4 = arith.constant 0 : index
    %3 = vector.load %arg3[%c0_3, %c0_4] : memref<1x256xf32, #tpu.memory_space<vmem>>, vector<1x256xf32>
    %c0_5 = arith.constant 0 : index
    %c0_6 = arith.constant 0 : index
    %4 = vector.load %arg4[%c0_5, %c0_6] : memref<256x128xbf16, #tpu.memory_space<vmem>>, vector<256x128xbf16>
    %cst = arith.constant dense<0.000000e+00> : vector<8x256xf32>
    %5 = tpu.matmul %1, %2, %cst {dimension_numbers = #tpu.dot_dimension_numbers<[1], [0], [0], [1], [0, 0, 1, 1], [], []>} : vector<8x128xbf16>, vector<128x256xbf16>, vector<8x256xf32> -> vector<8x256xf32>
    %6 = vector.broadcast %3 : vector<1x256xf32> to vector<8x256xf32>
    %7 = arith.addf %5, %6 : vector<8x256xf32>
    %cst_7 = arith.constant 0.000000e+00 : f32
    %8 = vector.broadcast %cst_7 : f32 to vector<8x256xf32>
    %9 = arith.maximumf %7, %8 : vector<8x256xf32>
    %10 = arith.truncf %9 : vector<8x256xf32> to vector<8x256xbf16>
    %cst_8 = arith.constant dense<0.000000e+00> : vector<8x128xf32>
    %11 = tpu.matmul %10, %4, %cst_8 {dimension_numbers = #tpu.dot_dimension_numbers<[1], [0], [0], [1], [0, 0, 1, 1], [], []>} : vector<8x256xbf16>, vector<256x128xbf16>, vector<8x128xf32> -> vector<8x128xf32>
    %c0_9 = arith.constant 0 : index
    %c0_10 = arith.constant 0 : index
    %12 = vector.load %arg5[%c0_9, %c0_10] : memref<1x128xf32, #tpu.memory_space<vmem>>, vector<1x128xf32>
    %13 = vector.broadcast %12 : vector<1x128xf32> to vector<8x128xf32>
    %14 = arith.addf %11, %13 : vector<8x128xf32>
    %c0_11 = arith.constant 0 : index
    %c0_12 = arith.constant 0 : index
    %15 = vector.load %arg6[%c0_11, %c0_12] : memref<8x128xf32, #tpu.memory_space<vmem>>, vector<8x128xf32>
    tpu.vector_store %arg6[%c0_11, %c0_12], %14 {strides = array<i32>} : memref<8x128xf32, #tpu.memory_space<vmem>>, vector<8x128xf32>,
    return
  }
  func.func @transform_0(%arg0: i32) -> (i32, i32) {
    %c0_i32 = arith.constant 0 : i32
    %c0_i32_0 = arith.constant 0 : i32
    return %arg0, %c0_i32 : i32, i32
  }
  func.func @transform_1(%arg0: i32) -> (i32, i32) {
    %c0_i32 = arith.constant 0 : i32
    %c0_i32_0 = arith.constant 0 : i32
    %c0_i32_1 = arith.constant 0 : i32
    return %c0_i32, %c0_i32_0 : i32, i32
  }
  func.func @transform_2(%arg0: i32) -> (i32, i32) {
    %c0_i32 = arith.constant 0 : i32
    %c0_i32_0 = arith.constant 0 : i32
    %c0_i32_1 = arith.constant 0 : i32
    return %c0_i32, %c0_i32_0 : i32, i32
  }
  func.func @transform_3(%arg0: i32) -> (i32, i32) {
    %c0_i32 = arith.constant 0 : i32
    %c0_i32_0 = arith.constant 0 : i32
    %c0_i32_1 = arith.constant 0 : i32
    return %c0_i32, %c0_i32_0 : i32, i32
  }
  func.func @transform_4(%arg0: i32) -> (i32, i32) {
    %c0_i32 = arith.constant 0 : i32
    %c0_i32_0 = arith.constant 0 : i32
    %c0_i32_1 = arith.constant 0 : i32
    return %c0_i32, %c0_i32_0 : i32, i32
  }
  func.func @transform_5(%arg0: i32) -> (i32, i32) {
    %c0_i32 = arith.constant 0 : i32
    %c0_i32_0 = arith.constant 0 : i32
    return %arg0, %c0_i32 : i32, i32
  }
}

</mosaic_0001>

<llo_original>
// kernel: tpu_custom_call.1
$region0: #{tpu_custom_call.1}
  #allocation0 [shape = 'u32[]', space=smem, size = 0x4, offset = 0x4, fixed_abs, tag = 'smem constant byte address 0x4 - core index']
  #allocation1 [shape = 'u32[144,128]{1,0:T(1,128)}', space=vmem, size = 0x12000, scoped, tag = 'internal scratch']
  %s0 = inlined_call_operand.hbm [shape: f32[16,128], index: 0, kind: input, shape index: {}]
  %s1 = inlined_call_operand.hbm [shape: bf16[128,256], index: 1, kind: input, shape index: {}]
  %s2 = inlined_call_operand.vmem [shape: f32[1,256], index: 2, kind: input, shape index: {}]
  %s3 = inlined_call_operand.hbm [shape: bf16[256,128], index: 3, kind: input, shape index: {}]
  %s4 = inlined_call_operand.vmem [shape: f32[1,128], index: 4, kind: input, shape index: {}]
  %s5 = inlined_call_operand.hbm [shape: f32[16,128], index: 5, kind: output, shape index: {}]
  %s6 = sld [smem:[#allocation0]]
  $region65: #{tpu_custom_call.1} parent=0
    _
  %s8 = ssub.s32 1, %s6
  %s9 = scalar_select 0, %s8, %s6
  $region1: #{tpu_custom_call.1} parent=0
    #allocation2 [shape = 'u8[8192]{0}', space=vmem, size = 0x2000, scoped, tag = 'input window, operand 0']
    #allocation3 [shape = 's32[2]{0}', space=sflag, size = 0x8, scoped, tag = 'scoped memory for tpu_custom_call.1']
    #allocation4 [shape = 's32[2]{0}', space=sflag, size = 0x8, scoped, tag = 'scoped memory for tpu_custom_call.1']
    #allocation5 [shape = 'u8[65536]{0}', space=vmem, size = 0x10000, scoped, tag = 'input window, operand 1, single buffered']
    #allocation6 [shape = 's32[1]{0}', space=sflag, size = 0x4, scoped, tag = 'scoped memory for tpu_custom_call.1']
    #allocation7 [shape = 'u8[65536]{0}', space=vmem, size = 0x10000, scoped, tag = 'input window, operand 3, single buffered']
    #allocation8 [shape = 'u8[8192]{0}', space=vmem, size = 0x2000, scoped, tag = 'output window, operand 0']
    %10 = vsyncpa [#allocation3], 0
    %s11 = scalar_lea.sflag [#allocation3], 1
    %12 = vsyncpa %s11, 0
    %13 = vsyncpa [#allocation6], 0
    %14 = vsyncpa [#allocation4], 0
    %s15 = scalar_lea.sflag [#allocation4], 1
    %16 = vsyncpa %s15, 0
    loop: start=0, step=1, limit=4
    $region2: #{tpu_custom_call.1} parent=1 // loop_pre_header
      _
    $region3: #{tpu_custom_call.1} parent=1 // loop_header
      %s18 = sphi 0, %s22
      %p19 = scmp.ge.s32.totalorder %s18, 4
      %s28 = sphi 0, %s30
      %s31 = sphi 0, %s28
      %s32 = sphi 0, %s31
      %s48 = sphi 0, %s32
      %s52 = sphi 0, %s52
      %s54 = sphi 0, %s52
      %s55 = sphi 0, %s54
      %s69 = sphi 0, %s55
      %s73 = sphi 0, %s73
      %s75 = sphi 0, %s73
      %s76 = sphi 0, %s75
      %s90 = sphi 0, %s76
      %s94 = sphi 0, %s94
      %s96 = sphi 0, %s94
      %s97 = sphi 0, %s96
      %s111 = sphi 0, %s97
      %s115 = sphi 0, %s115
      %s117 = sphi 0, %s115
      %s118 = sphi 0, %s117
      %s132 = sphi 0, %s118
      %s138 = sphi 0, %s140
      %s141 = sphi 0, %s138
      %s142 = sphi 0, %s141
      %s158 = sphi 0, %s142
    $region4: #{tpu_custom_call.1} parent=1 // loop_header_branch
      %21 = sbr.rel (%p19) target = $region8
    $region5: #{tpu_custom_call.1} parent=1 // loop_body
      %s23 = ssub.s32 %s18, 1
      %s24 = ssub.s32 %s18, 2
      %s25 = sadd.s32 %s18, 1
      %s26 = ssub.s32 %s18, %s25
      %p27 = scmp.eq.s32.totalorder %s26, 0
      %s29 = sadd.s32 %s28, 1
      %s30 = scalar_select %p27, %s28, %s29
      %p33 = pneg %p27
      %p34 = scmp.eq.s32.totalorder %s18, 1
      %p35 = por %p33, %p34
      %p36 = scmp.ne.s32.totalorder %s28, %s31
      %p37 = scmp.eq.s32.totalorder %s18, 0
      %p38 = por %p36, %p37
      %p39 = scmp.ne.s32.totalorder %s28, %s31
      %p40 = scmp.eq.s32.totalorder %s23, 1
      %p41 = por %p39, %p40
      %p42 = scmp.ne.s32.totalorder %s31, %s32
      %p43 = scmp.eq.s32.totalorder %s23, 0
      %p44 = por %p42, %p43
      %p45 = scmp.ne.s32.totalorder %s31, %s32
      %p46 = scmp.eq.s32.totalorder %s24, 1
      %p47 = por %p45, %p46
      %p49 = scmp.ne.s32.totalorder %s32, %s48
      %p50 = scmp.eq.s32.totalorder %s24, 0
      %p51 = por %p49, %p50
      %s53 = sadd.s32 %s52, 1
      %p56 = scmp.eq.s32.totalorder %s18, 1
      %p57 = scmp.ne.s32.totalorder %s52, %s54
      %p58 = scmp.eq.s32.totalorder %s18, 0
      %p59 = por %p57, %p58
      %p60 = scmp.ne.s32.totalorder %s52, %s54
      %p61 = scmp.eq.s32.totalorder %s23, 1
      %p62 = por %p60, %p61
      %p63 = scmp.ne.s32.totalorder %s54, %s55
      %p64 = scmp.eq.s32.totalorder %s23, 0
      %p65 = por %p63, %p64
      %p66 = scmp.ne.s32.totalorder %s54, %s55
      %p67 = scmp.eq.s32.totalorder %s24, 1
      %p68 = por %p66, %p67
      %p70 = scmp.ne.s32.totalorder %s55, %s69
      %p71 = scmp.eq.s32.totalorder %s24, 0
      %p72 = por %p70, %p71
      %s74 = sadd.s32 %s73, 1
      %p77 = scmp.eq.s32.totalorder %s18, 1
      %p78 = scmp.ne.s32.totalorder %s73, %s75
      %p79 = scmp.eq.s32.totalorder %s18, 0
      %p80 = por %p78, %p79
      %p81 = scmp.ne.s32.totalorder %s73, %s75
      %p82 = scmp.eq.s32.totalorder %s23, 1
      %p83 = por %p81, %p82
      %p84 = scmp.ne.s32.totalorder %s75, %s76
      %p85 = scmp.eq.s32.totalorder %s23, 0
      %p86 = por %p84, %p85
      %p87 = scmp.ne.s32.totalorder %s75, %s76
      %p88 = scmp.eq.s32.totalorder %s24, 1
      %p89 = por %p87, %p88
      %p91 = scmp.ne.s32.totalorder %s76, %s90
      %p92 = scmp.eq.s32.totalorder %s24, 0
      %p93 = por %p91, %p92
      %s95 = sadd.s32 %s94, 1
      %p98 = scmp.eq.s32.totalorder %s18, 1
      %p99 = scmp.ne.s32.totalorder %s94, %s96
      %p100 = scmp.eq.s32.totalorder %s18, 0
      %p101 = por %p99, %p100
      %p102 = scmp.ne.s32.totalorder %s94, %s96
      %p103 = scmp.eq.s32.totalorder %s23, 1
      %p104 = por %p102, %p103
      %p105 = scmp.ne.s32.totalorder %s96, %s97
      %p106 = scmp.eq.s32.totalorder %s23, 0
      %p107 = por %p105, %p106
      %p108 = scmp.ne.s32.totalorder %s96, %s97
      %p109 = scmp.eq.s32.totalorder %s24, 1
      %p110 = por %p108, %p109
      %p112 = scmp.ne.s32.totalorder %s97, %s111
      %p113 = scmp.eq.s32.totalorder %s24, 0
      %p114 = por %p112, %p113
      %s116 = sadd.s32 %s115, 1
      %p119 = scmp.eq.s32.totalorder %s18, 1
      %p120 = scmp.ne.s32.totalorder %s115, %s117
      %p121 = scmp.eq.s32.totalorder %s18, 0
      %p122 = por %p120, %p121
      %p123 = scmp.ne.s32.totalorder %s115, %s117
      %p124 = scmp.eq.s32.totalorder %s23, 1
      %p125 = por %p123, %p124
      %p126 = scmp.ne.s32.totalorder %s117, %s118
      %p127 = scmp.eq.s32.totalorder %s23, 0
      %p128 = por %p126, %p127
      %p129 = scmp.ne.s32.totalorder %s117, %s118
      %p130 = scmp.eq.s32.totalorder %s24, 1
      %p131 = por %p129, %p130
      %p133 = scmp.ne.s32.totalorder %s118, %s132
      %p134 = scmp.eq.s32.totalorder %s24, 0
      %p135 = por %p133, %p134
      %s136 = ssub.s32 %s18, %s25
      %p137 = scmp.eq.s32.totalorder %s136, 0
      %s139 = sadd.s32 %s138, 1
      %s140 = scalar_select %p137, %s138, %s139
      %p143 = pneg %p137
      %p144 = scmp.eq.s32.totalorder %s18, 1
      %p145 = por %p143, %p144
      %p146 = scmp.ne.s32.totalorder %s138, %s141
      %p147 = scmp.eq.s32.totalorder %s18, 0
      %p148 = por %p146, %p147
      %p149 = scmp.ne.s32.totalorder %s138, %s141
      %p150 = scmp.eq.s32.totalorder %s23, 1
      %p151 = por %p149, %p150
      %p152 = scmp.ne.s32.totalorder %s141, %s142
      %p153 = scmp.eq.s32.totalorder %s23, 0
      %p154 = por %p152, %p153
      %p155 = scmp.ne.s32.totalorder %s141, %s142
      %p156 = scmp.eq.s32.totalorder %s24, 1
      %p157 = por %p155, %p156
      %p159 = scmp.ne.s32.totalorder %s142, %s158
      %p160 = scmp.eq.s32.totalorder %s24, 0
      %p161 = por %p159, %p160
      %p162 = scmp.le.s32.totalorder 1, %s18
      %p163 = scmp.lt.s32.totalorder %s18, 3
      %p164 = pnand %p162, %p163
      %p165 = pneg %p164
      // Predicated region
      $region9: #{tpu_custom_call.1} parent=5 // pred_check
        _
      $region10: #{tpu_custom_call.1} parent=5 // pred_check_branch
        %167 = sbr.rel (%p164) target = $region12
      $region11: #{tpu_custom_call.1} parent=5 // pred_region
        %s168 = ssub.s32 %s18, 1
        // Predicated region
        $region13: #{tpu_custom_call.1} parent=11 // pred_check
          %p169 = pneg %p65
        $region14: #{tpu_custom_call.1} parent=11 // pred_check_branch
          %171 = sbr.rel (%p169) target = $region16
        $region15: #{tpu_custom_call.1} parent=11 // pred_region
          %s173 = ssub.s32 2048, 2048
          %174 = vsyncadd [#allocation6], %s173
          %s175 = sshll.u32 [#allocation5], 4
          %s176 = int_to_ptr.vmem [resolvable:$true] %s175
          %181 = dma.hbm_to_vmem [thread:$0]  %s1, 2048, %s176, [#allocation6], 128, 128, 8
        $region16: #{tpu_custom_call.1} parent=11 // pred_fallthru
          _
        // Predicated region
        $region17: #{tpu_custom_call.1} parent=11 // pred_check
          %p182 = pneg %p86
        $region18: #{tpu_custom_call.1} parent=11 // pred_check_branch
          %184 = sbr.rel (%p182) target = $region20
        $region19: #{tpu_custom_call.1} parent=11 // pred_region
          _
        $region20: #{tpu_custom_call.1} parent=11 // pred_fallthru
          _
        // Predicated region
        $region21: #{tpu_custom_call.1} parent=11 // pred_check
          %p185 = pneg %p107
        $region22: #{tpu_custom_call.1} parent=11 // pred_check_branch
          %187 = sbr.rel (%p185) target = $region24
        $region23: #{tpu_custom_call.1} parent=11 // pred_region
          %s189 = ssub.s32 2048, 2048
          %190 = vsyncadd [#allocation6], %s189
          %s191 = sshll.u32 [#allocation7], 4
          %s192 = int_to_ptr.vmem [resolvable:$true] %s191
          %197 = dma.hbm_to_vmem [thread:$0]  %s3, 2048, %s192, [#allocation6], 64, 64, 4
        $region24: #{tpu_custom_call.1} parent=11 // pred_fallthru
          _
        // Predicated region
        $region25: #{tpu_custom_call.1} parent=11 // pred_check
          %p198 = pneg %p128
        $region26: #{tpu_custom_call.1} parent=11 // pred_check_branch
          %200 = sbr.rel (%p198) target = $region28
        $region27: #{tpu_custom_call.1} parent=11 // pred_region
          _
        $region28: #{tpu_custom_call.1} parent=11 // pred_fallthru
          _
      $region12: #{tpu_custom_call.1} parent=5 // pred_fallthru
        _
      %p201 = scmp.lt.s32.totalorder %s18, 2
      // Predicated region
      $region29: #{tpu_custom_call.1} parent=5 // pred_check
        %p202 = pneg %p201
      $region30: #{tpu_custom_call.1} parent=5 // pred_check_branch
        %204 = sbr.rel (%p202) target = $region32
      $region31: #{tpu_custom_call.1} parent=5 // pred_region
        // Predicated region
        $region33: #{tpu_custom_call.1} parent=31 // pred_check
          %p205 = pneg %p38
        $region34: #{tpu_custom_call.1} parent=31 // pred_check_branch
          %207 = sbr.rel (%p205) target = $region36
        $region35: #{tpu_custom_call.1} parent=31 // pred_region
          %s208 = sand.u32 %s28, 1
          %s209 = scalar_lea.sflag [#allocation3], %s208
          %s210 = sand.u32 %s28, 1
          %s211 = smul.addr %s210, 8
          %s212 = scalar_lea.vmem [#allocation2], %s211
          %s214 = ssub.s32 128, 128
          %215 = vsyncadd %s209, %s214
          %s216 = smul.addr %s18, 128
          %s217 = scalar_lea.hbm %s0, %s216
          %s219 = sshll.u32 %s212, 4
          %s220 = int_to_ptr.vmem [resolvable:$true] %s219
          %222 = dma.hbm_to_vmem [thread:$0]  %s217, 128, %s220, %s209
        $region36: #{tpu_custom_call.1} parent=31 // pred_fallthru
          _
      $region32: #{tpu_custom_call.1} parent=5 // pred_fallthru
        _
      %p223 = scmp.le.s32.totalorder 1, %s18
      %p224 = scmp.lt.s32.totalorder %s18, 3
      %p225 = pnand %p223, %p224
      %p226 = pneg %p225
      // Predicated region
      $region37: #{tpu_custom_call.1} parent=5 // pred_check
        _
      $region38: #{tpu_custom_call.1} parent=5 // pred_check_branch
        %228 = sbr.rel (%p225) target = $region40
      $region39: #{tpu_custom_call.1} parent=5 // pred_region
        %s229 = ssub.s32 %s18, 1
        %s230 = sand.u32 %s31, 1
        %s231 = scalar_lea.sflag [#allocation3], %s230
        %s232 = sand.u32 %s31, 1
        %s233 = smul.addr %s232, 8
        %s234 = scalar_lea.vmem [#allocation2], %s233
        // Predicated region
        $region41: #{tpu_custom_call.1} parent=39 // pred_check
          %p235 = pneg %p44
        $region42: #{tpu_custom_call.1} parent=39 // pred_check_branch
          %237 = sbr.rel (%p235) target = $region44
        $region43: #{tpu_custom_call.1} parent=39 // pred_region
          %238 = dma.done %s231, 128
        $region44: #{tpu_custom_call.1} parent=39 // pred_fallthru
          _
        // Predicated region
        $region45: #{tpu_custom_call.1} parent=39 // pred_check
          %p239 = pneg %p65
        $region46: #{tpu_custom_call.1} parent=39 // pred_check_branch
          %241 = sbr.rel (%p239) target = $region48
        $region47: #{tpu_custom_call.1} parent=39 // pred_region
          %242 = dma.done [#allocation6], 2048
        $region48: #{tpu_custom_call.1} parent=39 // pred_fallthru
          _
        // Predicated region
        $region49: #{tpu_custom_call.1} parent=39 // pred_check
          %p243 = pneg %p107
        $region50: #{tpu_custom_call.1} parent=39 // pred_check_branch
          %245 = sbr.rel (%p243) target = $region52
        $region51: #{tpu_custom_call.1} parent=39 // pred_region
          %246 = dma.done [#allocation6], 2048
        $region52: #{tpu_custom_call.1} parent=39 // pred_fallthru
          _
        %s247 = sand.u32 %s31, 1
        %s248 = scalar_lea.sflag [#allocation3], %s247
        %s249 = sand.u32 %s31, 1
        %s250 = smul.addr %s249, 8
        %s251 = scalar_lea.vmem [#allocation2], %s250
        %p252 = pneg %p44
        %p253 = pneg %p41
        %p254 = pneg %p65
        %p255 = pneg %p62
        %p256 = pneg %p86
        %p257 = pneg %p83
        %p258 = pneg %p107
        %p259 = pneg %p104
        %p260 = pneg %p128
        %p261 = pneg %p125
        %p262 = pneg %p154
        %p263 = pneg %p151
        %s264 = sand.u32 %s141, 1
        %s265 = scalar_lea.sflag [#allocation4], %s264
        %s266 = sand.u32 %s141, 1
        %s267 = smul.addr %s266, 8
        %s268 = scalar_lea.vmem [#allocation8], %s267
        %v270 = vld [vmem:[%s234] sm:$0xff]
        %v271 = vpack.c.bf16 %v270, %v270
        %v272 = vld [vmem:[#allocation5] sm:$0xff]
        %v273 = vld [vmem:[#allocation5 + $0x8] sm:$0xff]
        %v274 = vld [vmem:[#allocation5 + $0x10] sm:$0xff]
        %v275 = vld [vmem:[#allocation5 + $0x18] sm:$0xff]
        %v276 = vld [vmem:[#allocation5 + $0x20] sm:$0xff]
        %v277 = vld [vmem:[#allocation5 + $0x28] sm:$0xff]
        %v278 = vld [vmem:[#allocation5 + $0x30] sm:$0xff]
        %v279 = vld [vmem:[#allocation5 + $0x38] sm:$0xff]
        %v280 = vld [vmem:[#allocation5 + $0x40] sm:$0xff]
        %v281 = vld [vmem:[#allocation5 + $0x48] sm:$0xff]
        %v282 = vld [vmem:[#allocation5 + $0x50] sm:$0xff]
        %v283 = vld [vmem:[#allocation5 + $0x58] sm:$0xff]
        %v284 = vld [vmem:[#allocation5 + $0x60] sm:$0xff]
        %v285 = vld [vmem:[#allocation5 + $0x68] sm:$0xff]
        %v286 = vld [vmem:[#allocation5 + $0x70] sm:$0xff]
        %v287 = vld [vmem:[#allocation5 + $0x78] sm:$0xff]
        %v288 = vld [vmem:[%s2] sm:$0x3]
        %v289 = vld [vmem:[#allocation7] sm:$0xf]
        %v290 = vld [vmem:[#allocation7 + $0x4] sm:$0xf]
        %v291 = vld [vmem:[#allocation7 + $0x8] sm:$0xf]
        %v292 = vld [vmem:[#allocation7 + $0xc] sm:$0xf]
        %v293 = vld [vmem:[#allocation7 + $0x10] sm:$0xf]
        %v294 = vld [vmem:[#allocation7 + $0x14] sm:$0xf]
        %v295 = vld [vmem:[#allocation7 + $0x18] sm:$0xf]
        %v296 = vld [vmem:[#allocation7 + $0x1c] sm:$0xf]
        %v297 = vld [vmem:[#allocation7 + $0x20] sm:$0xf]
        %v298 = vld [vmem:[#allocation7 + $0x24] sm:$0xf]
        %v299 = vld [vmem:[#allocation7 + $0x28] sm:$0xf]
        %v300 = vld [vmem:[#allocation7 + $0x2c] sm:$0xf]
        %v301 = vld [vmem:[#allocation7 + $0x30] sm:$0xf]
        %v302 = vld [vmem:[#allocation7 + $0x34] sm:$0xf]
        %v303 = vld [vmem:[#allocation7 + $0x38] sm:$0xf]
        %v304 = vld [vmem:[#allocation7 + $0x3c] sm:$0xf]
        %v305 = vld [vmem:[#allocation7 + $0x40] sm:$0xf]
        %v306 = vld [vmem:[#allocation7 + $0x44] sm:$0xf]
        %v307 = vld [vmem:[#allocation7 + $0x48] sm:$0xf]
        %v308 = vld [vmem:[#allocation7 + $0x4c] sm:$0xf]
        %v309 = vld [vmem:[#allocation7 + $0x50] sm:$0xf]
        %v310 = vld [vmem:[#allocation7 + $0x54] sm:$0xf]
        %v311 = vld [vmem:[#allocation7 + $0x58] sm:$0xf]
        %v312 = vld [vmem:[#allocation7 + $0x5c] sm:$0xf]
        %v313 = vld [vmem:[#allocation7 + $0x60] sm:$0xf]
        %v314 = vld [vmem:[#allocation7 + $0x64] sm:$0xf]
        %v315 = vld [vmem:[#allocation7 + $0x68] sm:$0xf]
        %v316 = vld [vmem:[#allocation7 + $0x6c] sm:$0xf]
        %v317 = vld [vmem:[#allocation7 + $0x70] sm:$0xf]
        %v318 = vld [vmem:[#allocation7 + $0x74] sm:$0xf]
        %v319 = vld [vmem:[#allocation7 + $0x78] sm:$0xf]
        %v320 = vld [vmem:[#allocation7 + $0x7c] sm:$0xf]
        %v322 = vlaneseq
        %v323 = vshrl.u32 %v322, 7
        %v324 = vsub.s32 0, %v323
        %v325 = vrot.slane %v288, %v324
        %v326 = vlaneseq
        %v327 = vshrl.u32 %v326, 7
        %v328 = vsub.s32 1, %v327
        %v329 = vrot.slane %v288, %v328
        %v348 = vunpack.c.l.b16 %v272
        %v349 = vunpack.c.h.b16 %v272
        %v350 = vunpack.c.l.b16 %v273
        %v351 = vunpack.c.h.b16 %v273
        %v352 = vunpack.c.l.b16 %v274
        %v353 = vunpack.c.h.b16 %v274
        %v354 = vunpack.c.l.b16 %v275
        %v355 = vunpack.c.h.b16 %v275
        %v356 = vunpack.c.l.b16 %v276
        %v357 = vunpack.c.h.b16 %v276
        %v358 = vunpack.c.l.b16 %v277
        %v359 = vunpack.c.h.b16 %v277
        %v360 = vunpack.c.l.b16 %v278
        %v361 = vunpack.c.h.b16 %v278
        %v362 = vunpack.c.l.b16 %v279
        %v363 = vunpack.c.h.b16 %v279
        %v364 = vunpack.c.l.b16 %v280
        %v365 = vunpack.c.h.b16 %v280
        %v366 = vunpack.c.l.b16 %v281
        %v367 = vunpack.c.h.b16 %v281
        %v368 = vunpack.c.l.b16 %v282
        %v369 = vunpack.c.h.b16 %v282
        %v370 = vunpack.c.l.b16 %v283
        %v371 = vunpack.c.h.b16 %v283
        %v372 = vunpack.c.l.b16 %v284
        %v373 = vunpack.c.h.b16 %v284
        %v374 = vunpack.c.l.b16 %v285
        %v375 = vunpack.c.h.b16 %v285
        %v376 = vunpack.c.l.b16 %v286
        %v377 = vunpack.c.h.b16 %v286
        %v378 = vunpack.c.l.b16 %v287
        %v379 = vunpack.c.h.b16 %v287
        %v380 = vpack.c.b16 %v350, %v348
        %v381 = vpack.c.b16 %v351, %v349
        %v382 = vpack.c.b16 %v354, %v352
        %v383 = vpack.c.b16 %v355, %v353
        %v384 = vpack.c.b16 %v358, %v356
        %v385 = vpack.c.b16 %v359, %v357
        %v386 = vpack.c.b16 %v362, %v360
        %v387 = vpack.c.b16 %v363, %v361
        %v388 = vpack.c.b16 %v366, %v364
        %v389 = vpack.c.b16 %v367, %v365
        %v390 = vpack.c.b16 %v370, %v368
        %v391 = vpack.c.b16 %v371, %v369
        %v392 = vpack.c.b16 %v374, %v372
        %v393 = vpack.c.b16 %v375, %v373
        %v394 = vpack.c.b16 %v378, %v376
        %v395 = vpack.c.b16 %v379, %v377
        %412 = vmatprep.subr.bf16.mxu0 %v381
        %413 = vmatpush1.bf16.msra.mxu0 %v380
        %414 = vmatprep.subr.bf16.mxu0 %v383
        %415 = vmatpush1.bf16.msra.mxu0 %v382
        %416 = vmatprep.subr.bf16.mxu0 %v385
        %417 = vmatpush1.bf16.msra.mxu0 %v384
        %418 = vmatprep.subr.bf16.mxu0 %v387
        %419 = vmatpush1.bf16.msra.mxu0 %v386
        %420 = vmatprep.subr.bf16.mxu0 %v389
        %421 = vmatpush1.bf16.msra.mxu0 %v388
        %422 = vmatprep.subr.bf16.mxu0 %v391
        %423 = vmatpush1.bf16.msra.mxu0 %v390
        %424 = vmatprep.subr.bf16.mxu0 %v393
        %425 = vmatpush1.bf16.msra.mxu0 %v392
        %426 = vmatprep.subr.bf16.mxu0 %v395
        %427 = vmatpush1.bf16.msra.mxu0 %v394
        %428 = vmatprep.subr.bf16.mxu0 0
        %429 = vmatpush1.bf16.msra.mxu0 0
        %430 = vmatprep.subr.bf16.mxu0 0
        %431 = vmatpush1.bf16.msra.mxu0 0
        %432 = vmatprep.subr.bf16.mxu0 0
        %433 = vmatpush1.bf16.msra.mxu0 0
        %434 = vmatprep.subr.bf16.mxu0 0
        %435 = vmatpush1.bf16.msra.mxu0 0
        %436 = vmatprep.subr.bf16.mxu0 0
        %437 = vmatpush1.bf16.msra.mxu0 0
        %438 = vmatprep.subr.bf16.mxu0 0
        %439 = vmatpush1.bf16.msra.mxu0 0
        %440 = vmatprep.subr.bf16.mxu0 0
        %441 = vmatpush1.bf16.msra.mxu0 0
        %442 = vmatprep.subr.bf16.mxu0 0
        %443 = vmatpush1.bf16.msra.mxu0 0
        %444 = vmatprep.mubr.bf16.mxu0 0
        %445 = vmatmul.mubr.bf16.gmra.mrb[0].mxu0 %v271
        %v446 = vpop.f32.mrb[0].mxu0
        %v447 = vadd.f32 %v325, %v446
        %v448 = vpop.f32.mrb[0].mxu0
        %v449 = vadd.f32 %v329, %v448
        %v450 = vpop.f32.mrb[0].mxu0
        %v451 = vpop.f32.mrb[0].mxu0
        %452 = vdwg.mxu0
        %v453 = vmax.f32 %v447, 0.0
        %v454 = vmax.f32 %v449, 0.0
        %v455 = vpack.c.bf16 %v453, %v453
        %v456 = vpack.c.bf16 %v454, %v454
        %v457 = vld [vmem:[%s4] sm:$0x1]
        %v459 = vlaneseq
        %v460 = vshrl.u32 %v459, 7
        %v461 = vsub.s32 0, %v460
        %v462 = vrot.slane %v457, %v461
        %v496 = vunpack.c.l.b16 %v289
        %v497 = vunpack.c.l.b16 %v290
        %v498 = vunpack.c.l.b16 %v291
        %v499 = vunpack.c.l.b16 %v292
        %v500 = vunpack.c.l.b16 %v293
        %v501 = vunpack.c.l.b16 %v294
        %v502 = vunpack.c.l.b16 %v295
        %v503 = vunpack.c.l.b16 %v296
        %v504 = vunpack.c.l.b16 %v297
        %v505 = vunpack.c.l.b16 %v298
        %v506 = vunpack.c.l.b16 %v299
        %v507 = vunpack.c.l.b16 %v300
        %v508 = vunpack.c.l.b16 %v301
        %v509 = vunpack.c.l.b16 %v302
        %v510 = vunpack.c.l.b16 %v303
        %v511 = vunpack.c.l.b16 %v304
        %v512 = vunpack.c.l.b16 %v305
        %v513 = vunpack.c.l.b16 %v306
        %v514 = vunpack.c.l.b16 %v307
        %v515 = vunpack.c.l.b16 %v308
        %v516 = vunpack.c.l.b16 %v309
        %v517 = vunpack.c.l.b16 %v310
        %v518 = vunpack.c.l.b16 %v311
        %v519 = vunpack.c.l.b16 %v312
        %v520 = vunpack.c.l.b16 %v313
        %v521 = vunpack.c.l.b16 %v314
        %v522 = vunpack.c.l.b16 %v315
        %v523 = vunpack.c.l.b16 %v316
        %v524 = vunpack.c.l.b16 %v317
        %v525 = vunpack.c.l.b16 %v318
        %v526 = vunpack.c.l.b16 %v319
        %v527 = vunpack.c.l.b16 %v320
        %v528 = vpack.c.b16 %v497, %v496
        %v529 = vpack.c.b16 %v499, %v498
        %v530 = vpack.c.b16 %v501, %v500
        %v531 = vpack.c.b16 %v503, %v502
        %v532 = vpack.c.b16 %v505, %v504
        %v533 = vpack.c.b16 %v507, %v506
        %v534 = vpack.c.b16 %v509, %v508
        %v535 = vpack.c.b16 %v511, %v510
        %v536 = vpack.c.b16 %v513, %v512
        %v537 = vpack.c.b16 %v515, %v514
        %v538 = vpack.c.b16 %v517, %v516
        %v539 = vpack.c.b16 %v519, %v518
        %v540 = vpack.c.b16 %v521, %v520
        %v541 = vpack.c.b16 %v523, %v522
        %v542 = vpack.c.b16 %v525, %v524
        %v543 = vpack.c.b16 %v527, %v526
        %560 = vmatprep.subr.bf16.mxu0 0
        %561 = vmatpush1.bf16.msra.mxu0 %v528
        %562 = vmatprep.subr.bf16.mxu0 0
        %563 = vmatpush1.bf16.msra.mxu0 %v529
        %564 = vmatprep.subr.bf16.mxu0 0
        %565 = vmatpush1.bf16.msra.mxu0 %v530
        %566 = vmatprep.subr.bf16.mxu0 0
        %567 = vmatpush1.bf16.msra.mxu0 %v531
        %568 = vmatprep.subr.bf16.mxu0 0
        %569 = vmatpush1.bf16.msra.mxu0 %v532
        %570 = vmatprep.subr.bf16.mxu0 0
        %571 = vmatpush1.bf16.msra.mxu0 %v533
        %572 = vmatprep.subr.bf16.mxu0 0
        %573 = vmatpush1.bf16.msra.mxu0 %v534
        %574 = vmatprep.subr.bf16.mxu0 0
        %575 = vmatpush1.bf16.msra.mxu0 %v535
        %576 = vmatprep.subr.bf16.mxu0 0
        %577 = vmatpush1.bf16.msra.mxu0 %v536
        %578 = vmatprep.subr.bf16.mxu0 0
        %579 = vmatpush1.bf16.msra.mxu0 %v537
        %580 = vmatprep.subr.bf16.mxu0 0
        %581 = vmatpush1.bf16.msra.mxu0 %v538
        %582 = vmatprep.subr.bf16.mxu0 0
        %583 = vmatpush1.bf16.msra.mxu0 %v539
        %584 = vmatprep.subr.bf16.mxu0 0
        %585 = vmatpush1.bf16.msra.mxu0 %v540
        %586 = vmatprep.subr.bf16.mxu0 0
        %587 = vmatpush1.bf16.msra.mxu0 %v541
        %588 = vmatprep.subr.bf16.mxu0 0
        %589 = vmatpush1.bf16.msra.mxu0 %v542
        %590 = vmatprep.subr.bf16.mxu0 0
        %591 = vmatpush1.bf16.msra.mxu0 %v543
        %592 = vmatprep.mubr.bf16.mxu0 %v456
        %593 = vmatmul.mubr.bf16.gmra.mrb[0].mxu0 %v455
        %v594 = vpop.f32.mrb[0].mxu0
        %v595 = vadd.f32 %v462, %v594
        %v596 = vpop.f32.mrb[0].mxu0
        %v597 = vpop.f32.mrb[0].mxu0
        %v598 = vpop.f32.mrb[0].mxu0
        %599 = vdwg.mxu0
        %600 = vst [vmem:[%s268] sm:$0xff] %v595
        %s601 = sand.u32 %s141, 1
        %s602 = scalar_lea.sflag [#allocation4], %s601
        %s603 = sand.u32 %s141, 1
        %s604 = smul.addr %s603, 8
        %s605 = scalar_lea.vmem [#allocation8], %s604
        // Predicated region
        $region53: #{tpu_custom_call.1} parent=39 // pred_check
          %p606 = pneg %p151
        $region54: #{tpu_custom_call.1} parent=39 // pred_check_branch
          %608 = sbr.rel (%p606) target = $region56
        $region55: #{tpu_custom_call.1} parent=39 // pred_region
          %s610 = ssub.s32 128, 128
          %611 = vsyncadd %s602, %s610
          %s612 = smul.addr %s23, 128
          %s613 = scalar_lea.hbm %s5, %s612
          %s615 = sshll.u32 %s605, 4
          %s616 = int_to_ptr.vmem [resolvable:$true] %s615
          %618 = dma.vmem_to_hbm [thread:$0]  %s616, 128, %s613, %s602
        $region56: #{tpu_custom_call.1} parent=39 // pred_fallthru
          _
      $region40: #{tpu_custom_call.1} parent=5 // pred_fallthru
        _
      %p619 = scmp.le.s32.totalorder 2, %s18
      // Predicated region
      $region57: #{tpu_custom_call.1} parent=5 // pred_check
        %p620 = pneg %p619
      $region58: #{tpu_custom_call.1} parent=5 // pred_check_branch
        %622 = sbr.rel (%p620) target = $region60
      $region59: #{tpu_custom_call.1} parent=5 // pred_region
        %s623 = ssub.s32 %s18, 2
        // Predicated region
        $region61: #{tpu_custom_call.1} parent=59 // pred_check
          %p624 = pneg %p157
        $region62: #{tpu_custom_call.1} parent=59 // pred_check_branch
          %626 = sbr.rel (%p624) target = $region64
        $region63: #{tpu_custom_call.1} parent=59 // pred_region
          %s627 = sand.u32 %s142, 1
          %s628 = scalar_lea.sflag [#allocation4], %s627
          %s629 = sand.u32 %s142, 1
          %s630 = smul.addr %s629, 8
          %s631 = scalar_lea.vmem [#allocation8], %s630
          %632 = dma.done %s628, 128
        $region64: #{tpu_custom_call.1} parent=59 // pred_fallthru
          _
      $region60: #{tpu_custom_call.1} parent=5 // pred_fallthru
        _
    $region6: #{tpu_custom_call.1} parent=1 // loop_footer
      %s22 = sadd.s32 1, %s18
    $region7: #{tpu_custom_call.1} parent=1 // loop_footer_branch
      %17 = sbr.rel target = $region3
    $region8: #{tpu_custom_call.1} parent=1 // loop_exit
      _
    %633 = vsyncpa [#allocation3], 1
    %s634 = scalar_lea.sflag [#allocation3], 1
    %635 = vsyncpa %s634, 1
    %636 = vsyncpa [#allocation6], 1
    %637 = vsyncpa [#allocation4], 1
    %s638 = scalar_lea.sflag [#allocation4], 1
    %639 = vsyncpa %s638, 1

</llo_original>
